<compile_context>
chip_gen: v5e
topology: v5e:2x2
jax: 0.10.0
libtpu: 0.0.40
codegen_flags: <defaults>
</compile_context>

<pallas_src>
import functools

import numpy as np

import jax
import jax.numpy as jnp
from jax import lax
from jax.experimental import pallas as pl
from jax.experimental.pallas import tpu as pltpu


def _act(name, prelu_slope=0.25):
    if name == "tanh":
        return jnp.tanh
    if name == "relu":
        return lambda x: jnp.maximum(x, 0.0)
    if name == "prelu":
        # TODO(synk): a trained nn.PReLU has a learned slope; plumb it through
        # as a runtime scalar instead of a static Python float if needed.
        return lambda x: jnp.maximum(x, 0.0) + prelu_slope * jnp.minimum(x, 0.0)
    raise ValueError(f"unknown activation {name}")


# ----------------------------- kernel ----------------------------------------
def _deeponet_kernel(xg_ref, xs_ref, w0t_ref, w0b_ref, b0_ref, *refs,
                     layer_meta, act_trunk, act_branch,
                     prelu_trunk, prelu_branch, mm_dtype):
    """refs = (W1, b1, ..., W_{L-1}, b_{L-1}, R, S, out_ref).

    Each Wk is block-diagonal [trunk | branch]; layer_meta[k] gives
    (out_cols_trunk, out_cols_branch, trunk_has_act, branch_has_act).
    """
    out_ref = refs[-1]
    sel_ref = refs[-2]
    rep_ref = refs[-3]
    wrefs = refs[:-3]

    f_t = _act(act_trunk, prelu_trunk)
    f_b = _act(act_branch, prelu_branch)
    same_act = (act_trunk == act_branch) and (
        act_trunk != "prelu" or prelu_trunk == prelu_branch)

    def apply_acts(h, out_t, out_b, t_act, b_act):
        if t_act and b_act and same_act:
            return f_t(h)                              # one VPU/EUP pass
        if t_act or b_act:
            # Static per-layer column masks (trunk cols first, branch cols last).
            # TODO(synk): for fused widths >= 256 with tanh, gate the fusion (or
            # pad out_t to a 128-lane boundary) so the EUP doesn't do 2x work.
            col = lax.broadcasted_iota(jnp.int32, (1, out_t + out_b), 1)
            if t_act:
                h = jnp.where(col < out_t, f_t(h), h)
            if b_act:
                h = jnp.where(col >= out_t, f_b(h), h)
        return h

    # ----- layer 0: two separate dots into the fused width (no concat) -------
    out_t0, out_b0, t_act0, b_act0 = layer_meta[0]
    h = (jnp.dot(xg_ref[...].astype(mm_dtype), w0t_ref[...],
                 preferred_element_type=jnp.float32)
         + jnp.dot(xs_ref[...].astype(mm_dtype), w0b_ref[...],
                   preferred_element_type=jnp.float32)
         + b0_ref[...])
    h = apply_acts(h, out_t0, out_b0, t_act0, b_act0)

    # ----- remaining fused block-diagonal layers ------------------------------
    for li, (out_t, out_b, t_act, b_act) in enumerate(layer_meta[1:]):
        W = wrefs[2 * li][...]
        b = wrefs[2 * li + 1][...]
        h = jnp.dot(h.astype(mm_dtype), W,
                    preferred_element_type=jnp.float32) + b
        h = apply_acts(h, out_t, out_b, t_act, b_act)

    # ----- final contraction: y = sum_j coeff[b,i,j] * basis[b,j] ------------
    # h layout: [ basis (nb) | coeff (od*nb) ].
    # R replicates the nb basis columns onto the od*nb coeff positions (zeros
    # elsewhere); S sums each nb-sized group into output lane i. Two small MXU
    # pushes + one VPU multiply; no unaligned slices / concatenates.
    rep = jnp.dot(h, rep_ref[...], preferred_element_type=jnp.float32)
    prod = h * rep
    out_ref[...] = jnp.dot(prod, sel_ref[...],
                           preferred_element_type=jnp.float32)


# ----------------------- one-time weight preparation --------------------------
def _fuse_chains(trunk_params, branch_params, num_basis, output_dim):
    """Per-layer block-diagonal weights + static metadata (host-side numpy).

    The shorter chain is padded at the end with identity / zero-bias layers
    that receive no activation, so the fused chain has max(L_t, L_b) layers.

    TODO(synk): if fused layer widths grow past the native MXU tile
    (128 on v5e, 256 on v6e/v7x) the zero blocks become real extra vmatmul
    passes; at that point split trunk/branch into separate dots per layer.
    """
    n_t, n_b = len(trunk_params), len(branch_params)
    n = max(n_t, n_b)
    t_final = num_basis
    b_final = num_basis * output_dim

    fused, meta = [], []
    for i in range(n):
        if i < n_t:
            Wt = np.asarray(trunk_params[i][0], np.float32)
            bt = np.asarray(trunk_params[i][1], np.float32).reshape(1, -1)
            t_act = True                              # trunk: act after every linear
        else:
            Wt = np.eye(t_final, dtype=np.float32)
            bt = np.zeros((1, t_final), np.float32)
            t_act = False
        if i < n_b:
            Wb = np.asarray(branch_params[i][0], np.float32)
            bb = np.asarray(branch_params[i][1], np.float32).reshape(1, -1)
            b_act = i < n_b - 1                       # branch: no act on last linear
        else:
            Wb = np.eye(b_final, dtype=np.float32)
            bb = np.zeros((1, b_final), np.float32)
            b_act = False

        in_t, out_t = Wt.shape
        in_b, out_b = Wb.shape
        W = np.zeros((in_t + in_b, out_t + out_b), np.float32)
        W[:in_t, :out_t] = Wt
        W[in_t:, out_t:] = Wb
        b = np.concatenate([bt, bb], axis=1)
        fused.append((W, b))
        meta.append((out_t, out_b, t_act, b_act))
    return fused, tuple(meta)


def _choose_tb(B, tb_req, min_steps=8, floor=64):
    """Pick a batch tile: big for throughput, but with enough grid steps so
    v7x's two TensorCores each get several pipelined tiles."""
    tb = max(8, min(tb_req, B))
    if B >= min_steps * floor:
        tb = min(tb, B // min_steps)
    elif B >= 2 * floor:
        tb = min(tb, B // 2)
    tb = max(8, (tb // 8) * 8)
    return tb


def make_deeponet_fn(trunk_params, branch_params, *, act_trunk, act_branch,
                     num_basis, output_dim, tb=2048,
                     prelu_trunk=0.25, prelu_branch=0.25,
                     mm_dtype=jnp.float32):
    """Build fused weights / R / S once and return a jitted forward fn."""
    fused, layer_meta = _fuse_chains(
        trunk_params, branch_params, num_basis, output_dim)

    in_g = np.asarray(trunk_params[0][0]).shape[0]     # grid input dim
    W0, b0 = fused[0]
    flat = [jnp.asarray(W0[:in_g, :], mm_dtype),       # W0 top (grid rows)
            jnp.asarray(W0[in_g:, :], mm_dtype),       # W0 bottom (sensor rows)
            jnp.asarray(b0, jnp.float32)]
    for W, b in fused[1:]:
        flat += [jnp.asarray(W, mm_dtype), jnp.asarray(b, jnp.float32)]

    # 0/1 replicate matrix R and selector S for the final contraction.
    w_last = num_basis * (1 + output_dim)
    rep_np = np.zeros((w_last, w_last), np.float32)
    sel_np = np.zeros((w_last, output_dim), np.float32)
    for i in range(output_dim):
        for j in range(num_basis):
            rep_np[j, num_basis + i * num_basis + j] = 1.0
            sel_np[num_basis + i * num_basis + j, i] = 1.0
    rep = jnp.asarray(rep_np)
    sel = jnp.asarray(sel_np)

    kernel = functools.partial(
        _deeponet_kernel,
        layer_meta=layer_meta,
        act_trunk=act_trunk, act_branch=act_branch,
        prelu_trunk=prelu_trunk, prelu_branch=prelu_branch,
        mm_dtype=mm_dtype)

    @jax.jit
    def fwd(data_grid, data_sensor):
        B, d_g = data_grid.shape
        _, d_s = data_sensor.shape
        tb_eff = _choose_tb(B, tb)
        n_steps = pl.cdiv(B, tb_eff)
        B_pad = n_steps * tb_eff

        xg = data_grid.astype(jnp.float32)
        xs = data_sensor.astype(jnp.float32)
        if B_pad != B:                                 # remainder handling
            xg = jnp.pad(xg, ((0, B_pad - B), (0, 0)))
            xs = jnp.pad(xs, ((0, B_pad - B), (0, 0)))

        in_specs = [pl.BlockSpec((tb_eff, d_g), lambda i: (i, 0)),
                    pl.BlockSpec((tb_eff, d_s), lambda i: (i, 0))]
        in_specs += [pl.BlockSpec(a.shape, lambda i: (0, 0)) for a in flat]
        in_specs += [pl.BlockSpec(rep.shape, lambda i: (0, 0)),
                     pl.BlockSpec(sel.shape, lambda i: (0, 0))]

        y = pl.pallas_call(
            kernel,
            out_shape=jax.ShapeDtypeStruct((B_pad, output_dim), jnp.float32),
            grid=(n_steps,),
            in_specs=in_specs,
            # Block last dim == full array last dim (legal); writes only the
            # useful output_dim lanes -> no padded-output write amplification.
            out_specs=pl.BlockSpec((tb_eff, output_dim), lambda i: (i, 0)),
            compiler_params=pltpu.CompilerParams(
                dimension_semantics=("parallel",)),
        )(xg, xs, *flat, rep, sel)
        return y[:B] if B_pad != B else y

    return fwd


# ------------------------- pure-JAX reference --------------------------------
def deeponet_ref(data_grid, data_sensor, trunk_params, branch_params, *,
                 act_trunk, act_branch, output_dim, num_basis,
                 prelu_trunk=0.25, prelu_branch=0.25):
    f_t = _act(act_trunk, prelu_trunk)
    f_b = _act(act_branch, prelu_branch)
    h = data_grid
    for W, b in trunk_params:
        h = f_t(h @ W + b)
    g = data_sensor
    for li, (W, b) in enumerate(branch_params):
        g = g @ W + b
        if li < len(branch_params) - 1:
            g = f_b(g)
    coeff = g.reshape(-1, output_dim, num_basis)
    basis = h.reshape(-1, 1, num_basis)
    return jnp.sum(coeff * basis, axis=-1)


# ------------------------- parameter construction ----------------------------
def init_linear(key, fan_in, fan_out):
    # PyTorch nn.Linear default init: U(-1/sqrt(fan_in), 1/sqrt(fan_in)).
    kw, kb = jax.random.split(key)
    bound = 1.0 / (fan_in ** 0.5)
    W = jax.random.uniform(kw, (fan_in, fan_out), jnp.float32, -bound, bound)
    b = jax.random.uniform(kb, (1, fan_out), jnp.float32, -bound, bound)
    return W, b


def build_params(key, depth_trunk, width_trunk, depth_branch, width_branch,
                 num_sensor, input_dim, num_basis, output_dim):
    trunk_dims = [input_dim] + [width_trunk] * depth_trunk + [num_basis]
    branch_dims = [num_sensor] + [width_branch] * depth_branch + [num_basis * output_dim]
    keys = jax.random.split(key, len(trunk_dims) + len(branch_dims))
    trunk_params, branch_params = [], []
    ki = 0
    for i in range(len(trunk_dims) - 1):
        trunk_params.append(init_linear(keys[ki], trunk_dims[i], trunk_dims[i + 1]))
        ki += 1
    for i in range(len(branch_dims) - 1):
        branch_params.append(init_linear(keys[ki], branch_dims[i], branch_dims[i + 1]))
        ki += 1
    return trunk_params, branch_params


if __name__ == "__main__":
    depth_trunk, width_trunk, act_trunk = 2, 32, "tanh"
    depth_branch, width_branch, act_branch = 2, 32, "relu"
    num_sensor, input_dim, num_basis, output_dim = 16, 2, 8, 3
    B = 512   # _choose_tb -> tb=64, grid=8 (>= 4 steps per v7x TensorCore)

    key = jax.random.PRNGKey(0)
    k_grid, k_sensor, k_param = jax.random.split(key, 3)
    data_grid = jax.random.normal(k_grid, (B, input_dim), jnp.float32)
    data_sensor = jax.random.normal(k_sensor, (B, num_sensor), jnp.float32)

    trunk_params, branch_params = build_params(
        k_param, depth_trunk, width_trunk, depth_branch, width_branch,
        num_sensor, input_dim, num_basis, output_dim)

    fwd = make_deeponet_fn(
        trunk_params, branch_params,
        act_trunk=act_trunk, act_branch=act_branch,
        num_basis=num_basis, output_dim=output_dim)

    y = jax.block_until_ready(fwd(data_grid, data_sensor))

    y_ref = deeponet_ref(
        data_grid, data_sensor, trunk_params, branch_params,
        act_trunk=act_trunk, act_branch=act_branch,
        output_dim=output_dim, num_basis=num_basis)

    assert y.shape == (B, output_dim)
    assert jnp.allclose(y, y_ref, atol=2e-5, rtol=2e-5)
    print("KERNEL_OK")
</pallas_src>

<mosaic_0001>
module attributes {stable_mosaic.version = 11 : i64} {
  func.func @_deeponet_kernel(%arg0: i32, %arg1: memref<64x2xf32, #tpu.memory_space<vmem>>, %arg2: memref<64x16xf32, #tpu.memory_space<vmem>>, %arg3: memref<2x64xf32, #tpu.memory_space<vmem>>, %arg4: memref<16x64xf32, #tpu.memory_space<vmem>>, %arg5: memref<1x64xf32, #tpu.memory_space<vmem>>, %arg6: memref<64x64xf32, #tpu.memory_space<vmem>>, %arg7: memref<1x64xf32, #tpu.memory_space<vmem>>, %arg8: memref<64x32xf32, #tpu.memory_space<vmem>>, %arg9: memref<1x32xf32, #tpu.memory_space<vmem>>, %arg10: memref<32x32xf32, #tpu.memory_space<vmem>>, %arg11: memref<32x3xf32, #tpu.memory_space<vmem>>, %arg12: memref<64x3xf32, #tpu.memory_space<vmem>>) attributes {dimension_semantics = [#tpu.dimension_semantics<parallel>], iteration_bounds = array<i64: 8>, scalar_prefetch = 0 : i64, scratch_operands = 0 : i64, tpu.core_type = #tpu.core_type<tc>, window_params = [{transform_indices = @transform_0, window_bounds = array<i64: 64, 2>}, {transform_indices = @transform_1, window_bounds = array<i64: 64, 16>}, {pipeline_mode = #tpu.pipeline_mode<synchronous>, transform_indices = @transform_2, window_bounds = array<i64: 2, 64>}, {pipeline_mode = #tpu.pipeline_mode<synchronous>, transform_indices = @transform_3, window_bounds = array<i64: 16, 64>}, {pipeline_mode = #tpu.pipeline_mode<synchronous>, transform_indices = @transform_4, window_bounds = array<i64: 1, 64>}, {pipeline_mode = #tpu.pipeline_mode<synchronous>, transform_indices = @transform_5, window_bounds = array<i64: 64, 64>}, {pipeline_mode = #tpu.pipeline_mode<synchronous>, transform_indices = @transform_6, window_bounds = array<i64: 1, 64>}, {pipeline_mode = #tpu.pipeline_mode<synchronous>, transform_indices = @transform_7, window_bounds = array<i64: 64, 32>}, {pipeline_mode = #tpu.pipeline_mode<synchronous>, transform_indices = @transform_8, window_bounds = array<i64: 1, 32>}, {pipeline_mode = #tpu.pipeline_mode<synchronous>, transform_indices = @transform_9, window_bounds = array<i64: 32, 32>}, {pipeline_mode = #tpu.pipeline_mode<synchronous>, transform_indices = @transform_10, window_bounds = array<i64: 32, 3>}, {transform_indices = @transform_11, window_bounds = array<i64: 64, 3>}]} {
    %c0 = arith.constant 0 : index
    %c0_0 = arith.constant 0 : index
    %0 = vector.load %arg1[%c0, %c0_0] : memref<64x2xf32, #tpu.memory_space<vmem>>, vector<64x2xf32>
    %c0_1 = arith.constant 0 : index
    %c0_2 = arith.constant 0 : index
    %1 = vector.load %arg3[%c0_1, %c0_2] : memref<2x64xf32, #tpu.memory_space<vmem>>, vector<2x64xf32>
    %cst = arith.constant dense<0.000000e+00> : vector<64x64xf32>
    %2 = tpu.matmul %0, %1, %cst {dimension_numbers = #tpu.dot_dimension_numbers<[1], [0], [0], [1], [0, 0, 1, 1], [], []>} : vector<64x2xf32>, vector<2x64xf32>, vector<64x64xf32> -> vector<64x64xf32>
    %c0_3 = arith.constant 0 : index
    %c0_4 = arith.constant 0 : index
    %3 = vector.load %arg2[%c0_3, %c0_4] : memref<64x16xf32, #tpu.memory_space<vmem>>, vector<64x16xf32>
    %c0_5 = arith.constant 0 : index
    %c0_6 = arith.constant 0 : index
    %4 = vector.load %arg4[%c0_5, %c0_6] : memref<16x64xf32, #tpu.memory_space<vmem>>, vector<16x64xf32>
    %cst_7 = arith.constant dense<0.000000e+00> : vector<64x64xf32>
    %5 = tpu.matmul %3, %4, %cst_7 {dimension_numbers = #tpu.dot_dimension_numbers<[1], [0], [0], [1], [0, 0, 1, 1], [], []>} : vector<64x16xf32>, vector<16x64xf32>, vector<64x64xf32> -> vector<64x64xf32>
    %6 = arith.addf %2, %5 : vector<64x64xf32>
    %c0_8 = arith.constant 0 : index
    %c0_9 = arith.constant 0 : index
    %7 = vector.load %arg5[%c0_8, %c0_9] : memref<1x64xf32, #tpu.memory_space<vmem>>, vector<1x64xf32>
    %8 = vector.broadcast %7 : vector<1x64xf32> to vector<64x64xf32>
    %9 = arith.addf %6, %8 : vector<64x64xf32>
    %10 = tpu.iota {dimensions = array<i32: 1>} : vector<1x64xi32>
    %c32_i32 = arith.constant 32 : i32
    %11 = vector.broadcast %c32_i32 : i32 to vector<1x64xi32>
    %12 = arith.cmpi slt, %10, %11 : vector<1x64xi32>
    %13 = math.tanh %9 : vector<64x64xf32>
    %14 = vector.shape_cast %12 : vector<1x64xi1> to vector<1x64xi1>
    %15 = vector.broadcast %14 : vector<1x64xi1> to vector<64x64xi1>
    %16 = arith.select %15, %13, %9 : vector<64x64xi1>, vector<64x64xf32>
    %c32_i32_10 = arith.constant 32 : i32
    %17 = vector.broadcast %c32_i32_10 : i32 to vector<1x64xi32>
    %18 = arith.cmpi sge, %10, %17 : vector<1x64xi32>
    %cst_11 = arith.constant 0.000000e+00 : f32
    %19 = vector.broadcast %cst_11 : f32 to vector<64x64xf32>
    %20 = arith.maximumf %16, %19 : vector<64x64xf32>
    %21 = vector.shape_cast %18 : vector<1x64xi1> to vector<1x64xi1>
    %22 = vector.broadcast %21 : vector<1x64xi1> to vector<64x64xi1>
    %23 = arith.select %22, %20, %16 : vector<64x64xi1>, vector<64x64xf32>
    %c0_12 = arith.constant 0 : index
    %c0_13 = arith.constant 0 : index
    %24 = vector.load %arg6[%c0_12, %c0_13] : memref<64x64xf32, #tpu.memory_space<vmem>>, vector<64x64xf32>
    %c0_14 = arith.constant 0 : index
    %c0_15 = arith.constant 0 : index
    %25 = vector.load %arg7[%c0_14, %c0_15] : memref<1x64xf32, #tpu.memory_space<vmem>>, vector<1x64xf32>
    %cst_16 = arith.constant dense<0.000000e+00> : vector<64x64xf32>
    %26 = tpu.matmul %23, %24, %cst_16 {dimension_numbers = #tpu.dot_dimension_numbers<[1], [0], [0], [1], [0, 0, 1, 1], [], []>} : vector<64x64xf32>, vector<64x64xf32>, vector<64x64xf32> -> vector<64x64xf32>
    %27 = vector.broadcast %25 : vector<1x64xf32> to vector<64x64xf32>
    %28 = arith.addf %26, %27 : vector<64x64xf32>
    %29 = tpu.iota {dimensions = array<i32: 1>} : vector<1x64xi32>
    %c32_i32_17 = arith.constant 32 : i32
    %30 = vector.broadcast %c32_i32_17 : i32 to vector<1x64xi32>
    %31 = arith.cmpi slt, %29, %30 : vector<1x64xi32>
    %32 = math.tanh %28 : vector<64x64xf32>
    %33 = vector.shape_cast %31 : vector<1x64xi1> to vector<1x64xi1>
    %34 = vector.broadcast %33 : vector<1x64xi1> to vector<64x64xi1>
    %35 = arith.select %34, %32, %28 : vector<64x64xi1>, vector<64x64xf32>
    %c32_i32_18 = arith.constant 32 : i32
    %36 = vector.broadcast %c32_i32_18 : i32 to vector<1x64xi32>
    %37 = arith.cmpi sge, %29, %36 : vector<1x64xi32>
    %cst_19 = arith.constant 0.000000e+00 : f32
    %38 = vector.broadcast %cst_19 : f32 to vector<64x64xf32>
    %39 = arith.maximumf %35, %38 : vector<64x64xf32>
    %40 = vector.shape_cast %37 : vector<1x64xi1> to vector<1x64xi1>
    %41 = vector.broadcast %40 : vector<1x64xi1> to vector<64x64xi1>
    %42 = arith.select %41, %39, %35 : vector<64x64xi1>, vector<64x64xf32>
    %c0_20 = arith.constant 0 : index
    %c0_21 = arith.constant 0 : index
    %43 = vector.load %arg8[%c0_20, %c0_21] : memref<64x32xf32, #tpu.memory_space<vmem>>, vector<64x32xf32>
    %c0_22 = arith.constant 0 : index
    %c0_23 = arith.constant 0 : index
    %44 = vector.load %arg9[%c0_22, %c0_23] : memref<1x32xf32, #tpu.memory_space<vmem>>, vector<1x32xf32>
    %cst_24 = arith.constant dense<0.000000e+00> : vector<64x32xf32>
    %45 = tpu.matmul %42, %43, %cst_24 {dimension_numbers = #tpu.dot_dimension_numbers<[1], [0], [0], [1], [0, 0, 1, 1], [], []>} : vector<64x64xf32>, vector<64x32xf32>, vector<64x32xf32> -> vector<64x32xf32>
    %46 = vector.broadcast %44 : vector<1x32xf32> to vector<64x32xf32>
    %47 = arith.addf %45, %46 : vector<64x32xf32>
    %48 = tpu.iota {dimensions = array<i32: 1>} : vector<1x32xi32>
    %c8_i32 = arith.constant 8 : i32
    %49 = vector.broadcast %c8_i32 : i32 to vector<1x32xi32>
    %50 = arith.cmpi slt, %48, %49 : vector<1x32xi32>
    %51 = math.tanh %47 : vector<64x32xf32>
    %52 = vector.shape_cast %50 : vector<1x32xi1> to vector<1x32xi1>
    %53 = vector.broadcast %52 : vector<1x32xi1> to vector<64x32xi1>
    %54 = arith.select %53, %51, %47 : vector<64x32xi1>, vector<64x32xf32>
    %c0_25 = arith.constant 0 : index
    %c0_26 = arith.constant 0 : index
    %55 = vector.load %arg10[%c0_25, %c0_26] : memref<32x32xf32, #tpu.memory_space<vmem>>, vector<32x32xf32>
    %cst_27 = arith.constant dense<0.000000e+00> : vector<64x32xf32>
    %56 = tpu.matmul %54, %55, %cst_27 {dimension_numbers = #tpu.dot_dimension_numbers<[1], [0], [0], [1], [0, 0, 1, 1], [], []>} : vector<64x32xf32>, vector<32x32xf32>, vector<64x32xf32> -> vector<64x32xf32>
    %57 = arith.mulf %54, %56 : vector<64x32xf32>
    %c0_28 = arith.constant 0 : index
    %c0_29 = arith.constant 0 : index
    %58 = vector.load %arg11[%c0_28, %c0_29] : memref<32x3xf32, #tpu.memory_space<vmem>>, vector<32x3xf32>
    %cst_30 = arith.constant dense<0.000000e+00> : vector<64x3xf32>
    %59 = tpu.matmul %57, %58, %cst_30 {dimension_numbers = #tpu.dot_dimension_numbers<[1], [0], [0], [1], [0, 0, 1, 1], [], []>} : vector<64x32xf32>, vector<32x3xf32>, vector<64x3xf32> -> vector<64x3xf32>
    %c0_31 = arith.constant 0 : index
    %c0_32 = arith.constant 0 : index
    %60 = vector.load %arg12[%c0_31, %c0_32] : memref<64x3xf32, #tpu.memory_space<vmem>>, vector<64x3xf32>
    tpu.vector_store %arg12[%c0_31, %c0_32], %59 {strides = array<i32>} : memref<64x3xf32, #tpu.memory_space<vmem>>, vector<64x3xf32>,
    return
  }
  func.func @transform_0(%arg0: i32) -> (i32, i32) {
    %c0_i32 = arith.constant 0 : i32
    %c0_i32_0 = arith.constant 0 : i32
    return %arg0, %c0_i32 : i32, i32
  }
  func.func @transform_1(%arg0: i32) -> (i32, i32) {
    %c0_i32 = arith.constant 0 : i32
    %c0_i32_0 = arith.constant 0 : i32
    return %arg0, %c0_i32 : i32, i32
  }
  func.func @transform_2(%arg0: i32) -> (i32, i32) {
    %c0_i32 = arith.constant 0 : i32
    %c0_i32_0 = arith.constant 0 : i32
    %c0_i32_1 = arith.constant 0 : i32
    return %c0_i32, %c0_i32_0 : i32, i32
  }
  func.func @transform_3(%arg0: i32) -> (i32, i32) {
    %c0_i32 = arith.constant 0 : i32
    %c0_i32_0 = arith.constant 0 : i32
    %c0_i32_1 = arith.constant 0 : i32
    return %c0_i32, %c0_i32_0 : i32, i32
  }
  func.func @transform_4(%arg0: i32) -> (i32, i32) {
    %c0_i32 = arith.constant 0 : i32
    %c0_i32_0 = arith.constant 0 : i32
    %c0_i32_1 = arith.constant 0 : i32
    return %c0_i32, %c0_i32_0 : i32, i32
  }
  func.func @transform_5(%arg0: i32) -> (i32, i32) {
    %c0_i32 = arith.constant 0 : i32
    %c0_i32_0 = arith.constant 0 : i32
    %c0_i32_1 = arith.constant 0 : i32
    return %c0_i32, %c0_i32_0 : i32, i32
  }
  func.func @transform_6(%arg0: i32) -> (i32, i32) {
    %c0_i32 = arith.constant 0 : i32
    %c0_i32_0 = arith.constant 0 : i32
    %c0_i32_1 = arith.constant 0 : i32
    return %c0_i32, %c0_i32_0 : i32, i32
  }
  func.func @transform_7(%arg0: i32) -> (i32, i32) {
    %c0_i32 = arith.constant 0 : i32
    %c0_i32_0 = arith.constant 0 : i32
    %c0_i32_1 = arith.constant 0 : i32
    return %c0_i32, %c0_i32_0 : i32, i32
  }
  func.func @transform_8(%arg0: i32) -> (i32, i32) {
    %c0_i32 = arith.constant 0 : i32
    %c0_i32_0 = arith.constant 0 : i32
    %c0_i32_1 = arith.constant 0 : i32
    return %c0_i32, %c0_i32_0 : i32, i32
  }
  func.func @transform_9(%arg0: i32) -> (i32, i32) {
    %c0_i32 = arith.constant 0 : i32
    %c0_i32_0 = arith.constant 0 : i32
    %c0_i32_1 = arith.constant 0 : i32
    return %c0_i32, %c0_i32_0 : i32, i32
  }
  func.func @transform_10(%arg0: i32) -> (i32, i32) {
    %c0_i32 = arith.constant 0 : i32
    %c0_i32_0 = arith.constant 0 : i32
    %c0_i32_1 = arith.constant 0 : i32
    return %c0_i32, %c0_i32_0 : i32, i32
  }
  func.func @transform_11(%arg0: i32) -> (i32, i32) {
    %c0_i32 = arith.constant 0 : i32
    %c0_i32_0 = arith.constant 0 : i32
    return %arg0, %c0_i32 : i32, i32
  }
}

</mosaic_0001>

<llo_original>
// kernel: fwd.1
$region0: #{fwd.1}
  #allocation0 [shape = 'u32[]', space=smem, size = 0x4, offset = 0x4, fixed_abs, tag = 'smem constant byte address 0x4 - core index']
  #allocation1 [shape = 'u32[72,128]{1,0:T(1,128)}', space=vmem, size = 0x9000, scoped, tag = 'internal scratch']
  %s0 = inlined_call_operand.vmem [shape: f32[512,2], index: 0, kind: input, shape index: {}]
  %s1 = inlined_call_operand.vmem [shape: f32[512,16], index: 1, kind: input, shape index: {}]
  %s2 = inlined_call_operand.vmem [shape: f32[2,64], index: 2, kind: input, shape index: {}]
  %s3 = inlined_call_operand.vmem [shape: f32[16,64], index: 3, kind: input, shape index: {}]
  %s4 = inlined_call_operand.vmem [shape: f32[1,64], index: 4, kind: input, shape index: {}]
  %s5 = inlined_call_operand.vmem [shape: f32[64,64], index: 5, kind: input, shape index: {}]
  %s6 = inlined_call_operand.vmem [shape: f32[1,64], index: 6, kind: input, shape index: {}]
  %s7 = inlined_call_operand.vmem [shape: f32[64,32], index: 7, kind: input, shape index: {}]
  %s8 = inlined_call_operand.vmem [shape: f32[1,32], index: 8, kind: input, shape index: {}]
  %s9 = inlined_call_operand.vmem [shape: f32[32,32], index: 9, kind: input, shape index: {}]
  %s10 = inlined_call_operand.vmem [shape: f32[32,3], index: 10, kind: input, shape index: {}]
  %s11 = inlined_call_operand.vmem [shape: f32[512,3], index: 11, kind: output, shape index: {}]
  %s12 = sld [smem:[#allocation0]]
  $region77: #{fwd.1} parent=0
    _
  %s14 = ssub.s32 1, %s12
  %s15 = scalar_select 0, %s14, %s12
  loop: start=0, step=1, limit=10
  $region2: #{fwd.1} parent=0 // loop_pre_header
    _
  $region3: #{fwd.1} parent=0 // loop_header
    %s17 = sphi 0, %s21
    %p18 = scmp.ge.s32.totalorder %s17, 10
    %s27 = sphi 0, %s29
    %s30 = sphi 0, %s27
    %s31 = sphi 0, %s30
    %s47 = sphi 0, %s31
    %s53 = sphi 0, %s55
    %s56 = sphi 0, %s53
    %s57 = sphi 0, %s56
    %s73 = sphi 0, %s57
    %s77 = sphi 0, %s77
    %s79 = sphi 0, %s77
    %s80 = sphi 0, %s79
    %s94 = sphi 0, %s80
    %s98 = sphi 0, %s98
    %s100 = sphi 0, %s98
    %s101 = sphi 0, %s100
    %s115 = sphi 0, %s101
    %s119 = sphi 0, %s119
    %s121 = sphi 0, %s119
    %s122 = sphi 0, %s121
    %s136 = sphi 0, %s122
    %s140 = sphi 0, %s140
    %s142 = sphi 0, %s140
    %s143 = sphi 0, %s142
    %s157 = sphi 0, %s143
    %s161 = sphi 0, %s161
    %s163 = sphi 0, %s161
    %s164 = sphi 0, %s163
    %s178 = sphi 0, %s164
    %s182 = sphi 0, %s182
    %s184 = sphi 0, %s182
    %s185 = sphi 0, %s184
    %s199 = sphi 0, %s185
    %s203 = sphi 0, %s203
    %s205 = sphi 0, %s203
    %s206 = sphi 0, %s205
    %s220 = sphi 0, %s206
    %s224 = sphi 0, %s224
    %s226 = sphi 0, %s224
    %s227 = sphi 0, %s226
    %s241 = sphi 0, %s227
    %s245 = sphi 0, %s245
    %s247 = sphi 0, %s245
    %s248 = sphi 0, %s247
    %s262 = sphi 0, %s248
    %s268 = sphi 0, %s270
    %s271 = sphi 0, %s268
    %s272 = sphi 0, %s271
    %s288 = sphi 0, %s272
  $region4: #{fwd.1} parent=0 // loop_header_branch
    %20 = sbr.rel (%p18) target = $region8
  $region5: #{fwd.1} parent=0 // loop_body
    %s22 = ssub.s32 %s17, 1
    %s23 = ssub.s32 %s17, 2
    %s24 = sadd.s32 %s17, 1
    %s25 = ssub.s32 %s17, %s24
    %p26 = scmp.eq.s32.totalorder %s25, 0
    %s28 = sadd.s32 %s27, 1
    %s29 = scalar_select %p26, %s27, %s28
    %p32 = pneg %p26
    %p33 = scmp.eq.s32.totalorder %s17, 7
    %p34 = por %p32, %p33
    %p35 = scmp.ne.s32.totalorder %s27, %s30
    %p36 = scmp.eq.s32.totalorder %s17, 0
    %p37 = por %p35, %p36
    %p38 = scmp.ne.s32.totalorder %s27, %s30
    %p39 = scmp.eq.s32.totalorder %s22, 7
    %p40 = por %p38, %p39
    %p41 = scmp.ne.s32.totalorder %s30, %s31
    %p42 = scmp.eq.s32.totalorder %s22, 0
    %p43 = por %p41, %p42
    %p44 = scmp.ne.s32.totalorder %s30, %s31
    %p45 = scmp.eq.s32.totalorder %s23, 7
    %p46 = por %p44, %p45
    %p48 = scmp.ne.s32.totalorder %s31, %s47
    %p49 = scmp.eq.s32.totalorder %s23, 0
    %p50 = por %p48, %p49
    %s51 = ssub.s32 %s17, %s24
    %p52 = scmp.eq.s32.totalorder %s51, 0
    %s54 = sadd.s32 %s53, 1
    %s55 = scalar_select %p52, %s53, %s54
    %p58 = pneg %p52
    %p59 = scmp.eq.s32.totalorder %s17, 7
    %p60 = por %p58, %p59
    %p61 = scmp.ne.s32.totalorder %s53, %s56
    %p62 = scmp.eq.s32.totalorder %s17, 0
    %p63 = por %p61, %p62
    %p64 = scmp.ne.s32.totalorder %s53, %s56
    %p65 = scmp.eq.s32.totalorder %s22, 7
    %p66 = por %p64, %p65
    %p67 = scmp.ne.s32.totalorder %s56, %s57
    %p68 = scmp.eq.s32.totalorder %s22, 0
    %p69 = por %p67, %p68
    %p70 = scmp.ne.s32.totalorder %s56, %s57
    %p71 = scmp.eq.s32.totalorder %s23, 7
    %p72 = por %p70, %p71
    %p74 = scmp.ne.s32.totalorder %s57, %s73
    %p75 = scmp.eq.s32.totalorder %s23, 0
    %p76 = por %p74, %p75
    %s78 = sadd.s32 %s77, 1
    %p81 = scmp.eq.s32.totalorder %s17, 7
    %p82 = scmp.ne.s32.totalorder %s77, %s79
    %p83 = scmp.eq.s32.totalorder %s17, 0
    %p84 = por %p82, %p83
    %p85 = scmp.ne.s32.totalorder %s77, %s79
    %p86 = scmp.eq.s32.totalorder %s22, 7
    %p87 = por %p85, %p86
    %p88 = scmp.ne.s32.totalorder %s79, %s80
    %p89 = scmp.eq.s32.totalorder %s22, 0
    %p90 = por %p88, %p89
    %p91 = scmp.ne.s32.totalorder %s79, %s80
    %p92 = scmp.eq.s32.totalorder %s23, 7
    %p93 = por %p91, %p92
    %p95 = scmp.ne.s32.totalorder %s80, %s94
    %p96 = scmp.eq.s32.totalorder %s23, 0
    %p97 = por %p95, %p96
    %s99 = sadd.s32 %s98, 1
    %p102 = scmp.eq.s32.totalorder %s17, 7
    %p103 = scmp.ne.s32.totalorder %s98, %s100
    %p104 = scmp.eq.s32.totalorder %s17, 0
    %p105 = por %p103, %p104
    %p106 = scmp.ne.s32.totalorder %s98, %s100
    %p107 = scmp.eq.s32.totalorder %s22, 7
    %p108 = por %p106, %p107
    %p109 = scmp.ne.s32.totalorder %s100, %s101
    %p110 = scmp.eq.s32.totalorder %s22, 0
    %p111 = por %p109, %p110
    %p112 = scmp.ne.s32.totalorder %s100, %s101
    %p113 = scmp.eq.s32.totalorder %s23, 7
    %p114 = por %p112, %p113
    %p116 = scmp.ne.s32.totalorder %s101, %s115
    %p117 = scmp.eq.s32.totalorder %s23, 0
    %p118 = por %p116, %p117
    %s120 = sadd.s32 %s119, 1
    %p123 = scmp.eq.s32.totalorder %s17, 7
    %p124 = scmp.ne.s32.totalorder %s119, %s121
    %p125 = scmp.eq.s32.totalorder %s17, 0
    %p126 = por %p124, %p125
    %p127 = scmp.ne.s32.totalorder %s119, %s121
    %p128 = scmp.eq.s32.totalorder %s22, 7
    %p129 = por %p127, %p128
    %p130 = scmp.ne.s32.totalorder %s121, %s122
    %p131 = scmp.eq.s32.totalorder %s22, 0
    %p132 = por %p130, %p131
    %p133 = scmp.ne.s32.totalorder %s121, %s122
    %p134 = scmp.eq.s32.totalorder %s23, 7
    %p135 = por %p133, %p134
    %p137 = scmp.ne.s32.totalorder %s122, %s136
    %p138 = scmp.eq.s32.totalorder %s23, 0
    %p139 = por %p137, %p138
    %s141 = sadd.s32 %s140, 1
    %p144 = scmp.eq.s32.totalorder %s17, 7
    %p145 = scmp.ne.s32.totalorder %s140, %s142
    %p146 = scmp.eq.s32.totalorder %s17, 0
    %p147 = por %p145, %p146
    %p148 = scmp.ne.s32.totalorder %s140, %s142
    %p149 = scmp.eq.s32.totalorder %s22, 7
    %p150 = por %p148, %p149
    %p151 = scmp.ne.s32.totalorder %s142, %s143
    %p152 = scmp.eq.s32.totalorder %s22, 0
    %p153 = por %p151, %p152
    %p154 = scmp.ne.s32.totalorder %s142, %s143
    %p155 = scmp.eq.s32.totalorder %s23, 7
    %p156 = por %p154, %p155
    %p158 = scmp.ne.s32.totalorder %s143, %s157
    %p159 = scmp.eq.s32.totalorder %s23, 0
    %p160 = por %p158, %p159
    %s162 = sadd.s32 %s161, 1
    %p165 = scmp.eq.s32.totalorder %s17, 7
    %p166 = scmp.ne.s32.totalorder %s161, %s163
    %p167 = scmp.eq.s32.totalorder %s17, 0
    %p168 = por %p166, %p167
    %p169 = scmp.ne.s32.totalorder %s161, %s163
    %p170 = scmp.eq.s32.totalorder %s22, 7
    %p171 = por %p169, %p170
    %p172 = scmp.ne.s32.totalorder %s163, %s164
    %p173 = scmp.eq.s32.totalorder %s22, 0
    %p174 = por %p172, %p173
    %p175 = scmp.ne.s32.totalorder %s163, %s164
    %p176 = scmp.eq.s32.totalorder %s23, 7
    %p177 = por %p175, %p176
    %p179 = scmp.ne.s32.totalorder %s164, %s178
    %p180 = scmp.eq.s32.totalorder %s23, 0
    %p181 = por %p179, %p180
    %s183 = sadd.s32 %s182, 1
    %p186 = scmp.eq.s32.totalorder %s17, 7
    %p187 = scmp.ne.s32.totalorder %s182, %s184
    %p188 = scmp.eq.s32.totalorder %s17, 0
    %p189 = por %p187, %p188
    %p190 = scmp.ne.s32.totalorder %s182, %s184
    %p191 = scmp.eq.s32.totalorder %s22, 7
    %p192 = por %p190, %p191
    %p193 = scmp.ne.s32.totalorder %s184, %s185
    %p194 = scmp.eq.s32.totalorder %s22, 0
    %p195 = por %p193, %p194
    %p196 = scmp.ne.s32.totalorder %s184, %s185
    %p197 = scmp.eq.s32.totalorder %s23, 7
    %p198 = por %p196, %p197
    %p200 = scmp.ne.s32.totalorder %s185, %s199
    %p201 = scmp.eq.s32.totalorder %s23, 0
    %p202 = por %p200, %p201
    %s204 = sadd.s32 %s203, 1
    %p207 = scmp.eq.s32.totalorder %s17, 7
    %p208 = scmp.ne.s32.totalorder %s203, %s205
    %p209 = scmp.eq.s32.totalorder %s17, 0
    %p210 = por %p208, %p209
    %p211 = scmp.ne.s32.totalorder %s203, %s205
    %p212 = scmp.eq.s32.totalorder %s22, 7
    %p213 = por %p211, %p212
    %p214 = scmp.ne.s32.totalorder %s205, %s206
    %p215 = scmp.eq.s32.totalorder %s22, 0
    %p216 = por %p214, %p215
    %p217 = scmp.ne.s32.totalorder %s205, %s206
    %p218 = scmp.eq.s32.totalorder %s23, 7
    %p219 = por %p217, %p218
    %p221 = scmp.ne.s32.totalorder %s206, %s220
    %p222 = scmp.eq.s32.totalorder %s23, 0
    %p223 = por %p221, %p222
    %s225 = sadd.s32 %s224, 1
    %p228 = scmp.eq.s32.totalorder %s17, 7
    %p229 = scmp.ne.s32.totalorder %s224, %s226
    %p230 = scmp.eq.s32.totalorder %s17, 0
    %p231 = por %p229, %p230
    %p232 = scmp.ne.s32.totalorder %s224, %s226
    %p233 = scmp.eq.s32.totalorder %s22, 7
    %p234 = por %p232, %p233
    %p235 = scmp.ne.s32.totalorder %s226, %s227
    %p236 = scmp.eq.s32.totalorder %s22, 0
    %p237 = por %p235, %p236
    %p238 = scmp.ne.s32.totalorder %s226, %s227
    %p239 = scmp.eq.s32.totalorder %s23, 7
    %p240 = por %p238, %p239
    %p242 = scmp.ne.s32.totalorder %s227, %s241
    %p243 = scmp.eq.s32.totalorder %s23, 0
    %p244 = por %p242, %p243
    %s246 = sadd.s32 %s245, 1
    %p249 = scmp.eq.s32.totalorder %s17, 7
    %p250 = scmp.ne.s32.totalorder %s245, %s247
    %p251 = scmp.eq.s32.totalorder %s17, 0
    %p252 = por %p250, %p251
    %p253 = scmp.ne.s32.totalorder %s245, %s247
    %p254 = scmp.eq.s32.totalorder %s22, 7
    %p255 = por %p253, %p254
    %p256 = scmp.ne.s32.totalorder %s247, %s248
    %p257 = scmp.eq.s32.totalorder %s22, 0
    %p258 = por %p256, %p257
    %p259 = scmp.ne.s32.totalorder %s247, %s248
    %p260 = scmp.eq.s32.totalorder %s23, 7
    %p261 = por %p259, %p260
    %p263 = scmp.ne.s32.totalorder %s248, %s262
    %p264 = scmp.eq.s32.totalorder %s23, 0
    %p265 = por %p263, %p264
    %s266 = ssub.s32 %s17, %s24
    %p267 = scmp.eq.s32.totalorder %s266, 0
    %s269 = sadd.s32 %s268, 1
    %s270 = scalar_select %p267, %s268, %s269
    %p273 = pneg %p267
    %p274 = scmp.eq.s32.totalorder %s17, 7
    %p275 = por %p273, %p274
    %p276 = scmp.ne.s32.totalorder %s268, %s271
    %p277 = scmp.eq.s32.totalorder %s17, 0
    %p278 = por %p276, %p277
    %p279 = scmp.ne.s32.totalorder %s268, %s271
    %p280 = scmp.eq.s32.totalorder %s22, 7
    %p281 = por %p279, %p280
    %p282 = scmp.ne.s32.totalorder %s271, %s272
    %p283 = scmp.eq.s32.totalorder %s22, 0
    %p284 = por %p282, %p283
    %p285 = scmp.ne.s32.totalorder %s271, %s272
    %p286 = scmp.eq.s32.totalorder %s23, 7
    %p287 = por %p285, %p286
    %p289 = scmp.ne.s32.totalorder %s272, %s288
    %p290 = scmp.eq.s32.totalorder %s23, 0
    %p291 = por %p289, %p290
    %p292 = scmp.le.s32.totalorder 1, %s17
    %p293 = scmp.lt.s32.totalorder %s17, 9
    %p294 = pnand %p292, %p293
    %p295 = pneg %p294
    // Predicated region
    $region9: #{fwd.1} parent=5 // pred_check
      _
    $region10: #{fwd.1} parent=5 // pred_check_branch
      %297 = sbr.rel (%p294) target = $region12
    $region11: #{fwd.1} parent=5 // pred_region
      %s298 = ssub.s32 %s17, 1
      // Predicated region
      $region13: #{fwd.1} parent=11 // pred_check
        %p299 = pneg %p90
      $region14: #{fwd.1} parent=11 // pred_check_branch
        %301 = sbr.rel (%p299) target = $region16
      $region15: #{fwd.1} parent=11 // pred_region
        _
      $region16: #{fwd.1} parent=11 // pred_fallthru
        _
      // Predicated region
      $region17: #{fwd.1} parent=11 // pred_check
        %p302 = pneg %p111
      $region18: #{fwd.1} parent=11 // pred_check_branch
        %304 = sbr.rel (%p302) target = $region20
      $region19: #{fwd.1} parent=11 // pred_region
        _
      $region20: #{fwd.1} parent=11 // pred_fallthru
        _
      // Predicated region
      $region21: #{fwd.1} parent=11 // pred_check
        %p305 = pneg %p132
      $region22: #{fwd.1} parent=11 // pred_check_branch
        %307 = sbr.rel (%p305) target = $region24
      $region23: #{fwd.1} parent=11 // pred_region
        _
      $region24: #{fwd.1} parent=11 // pred_fallthru
        _
      // Predicated region
      $region25: #{fwd.1} parent=11 // pred_check
        %p308 = pneg %p153
      $region26: #{fwd.1} parent=11 // pred_check_branch
        %310 = sbr.rel (%p308) target = $region28
      $region27: #{fwd.1} parent=11 // pred_region
        _
      $region28: #{fwd.1} parent=11 // pred_fallthru
        _
      // Predicated region
      $region29: #{fwd.1} parent=11 // pred_check
        %p311 = pneg %p174
      $region30: #{fwd.1} parent=11 // pred_check_branch
        %313 = sbr.rel (%p311) target = $region32
      $region31: #{fwd.1} parent=11 // pred_region
        _
      $region32: #{fwd.1} parent=11 // pred_fallthru
        _
      // Predicated region
      $region33: #{fwd.1} parent=11 // pred_check
        %p314 = pneg %p195
      $region34: #{fwd.1} parent=11 // pred_check_branch
        %316 = sbr.rel (%p314) target = $region36
      $region35: #{fwd.1} parent=11 // pred_region
        _
      $region36: #{fwd.1} parent=11 // pred_fallthru
        _
      // Predicated region
      $region37: #{fwd.1} parent=11 // pred_check
        %p317 = pneg %p216
      $region38: #{fwd.1} parent=11 // pred_check_branch
        %319 = sbr.rel (%p317) target = $region40
      $region39: #{fwd.1} parent=11 // pred_region
        _
      $region40: #{fwd.1} parent=11 // pred_fallthru
        _
      // Predicated region
      $region41: #{fwd.1} parent=11 // pred_check
        %p320 = pneg %p237
      $region42: #{fwd.1} parent=11 // pred_check_branch
        %322 = sbr.rel (%p320) target = $region44
      $region43: #{fwd.1} parent=11 // pred_region
        _
      $region44: #{fwd.1} parent=11 // pred_fallthru
        _
      // Predicated region
      $region45: #{fwd.1} parent=11 // pred_check
        %p323 = pneg %p258
      $region46: #{fwd.1} parent=11 // pred_check_branch
        %325 = sbr.rel (%p323) target = $region48
      $region47: #{fwd.1} parent=11 // pred_region
        _
      $region48: #{fwd.1} parent=11 // pred_fallthru
        _
    $region12: #{fwd.1} parent=5 // pred_fallthru
      _
    %p326 = scmp.lt.s32.totalorder %s17, 8
    // Predicated region
    $region49: #{fwd.1} parent=5 // pred_check
      %p327 = pneg %p326
    $region50: #{fwd.1} parent=5 // pred_check_branch
      %329 = sbr.rel (%p327) target = $region52
    $region51: #{fwd.1} parent=5 // pred_region
      // Predicated region
      $region53: #{fwd.1} parent=51 // pred_check
        %p330 = pneg %p37
      $region54: #{fwd.1} parent=51 // pred_check_branch
        %332 = sbr.rel (%p330) target = $region56
      $region55: #{fwd.1} parent=51 // pred_region
        %s333 = smul.u32 8, %s17
        %p334 = scmp.lt.s32.totalorder %s333, 63
        %s335 = scalar_select %p334, %s333, 63
        %s336 = smul.addr %s335, 8
        %s337 = scalar_lea.vmem %s0, %s336
        %s338 = smul.u32 8, %s17
      $region56: #{fwd.1} parent=51 // pred_fallthru
        _
      // Predicated region
      $region57: #{fwd.1} parent=51 // pred_check
        %p339 = pneg %p63
      $region58: #{fwd.1} parent=51 // pred_check_branch
        %341 = sbr.rel (%p339) target = $region60
      $region59: #{fwd.1} parent=51 // pred_region
        %s342 = smul.u32 8, %s17
        %p343 = scmp.lt.s32.totalorder %s342, 63
        %s344 = scalar_select %p343, %s342, 63
        %s345 = smul.addr %s344, 8
        %s346 = scalar_lea.vmem %s1, %s345
        %s347 = smul.u32 8, %s17
      $region60: #{fwd.1} parent=51 // pred_fallthru
        _
    $region52: #{fwd.1} parent=5 // pred_fallthru
      _
    %p348 = scmp.le.s32.totalorder 1, %s17
    %p349 = scmp.lt.s32.totalorder %s17, 9
    %p350 = pnand %p348, %p349
    %p351 = pneg %p350
    // Predicated region
    $region61: #{fwd.1} parent=5 // pred_check
      _
    $region62: #{fwd.1} parent=5 // pred_check_branch
      %353 = sbr.rel (%p350) target = $region64
    $region63: #{fwd.1} parent=5 // pred_region
      %s354 = ssub.s32 %s17, 1
      %s355 = smul.u32 8, %s22
      %p356 = scmp.lt.s32.totalorder %s355, 63
      %s357 = scalar_select %p356, %s355, 63
      %s358 = smul.addr %s357, 8
      %s359 = scalar_lea.vmem %s0, %s358
      %p360 = pneg %p43
      %p361 = pneg %p40
      %s362 = smul.u32 8, %s22
      %p363 = scmp.lt.s32.totalorder %s362, 63
      %s364 = scalar_select %p363, %s362, 63
      %s365 = smul.addr %s364, 8
      %s366 = scalar_lea.vmem %s1, %s365
      %p367 = pneg %p69
      %p368 = pneg %p66
      %p369 = pneg %p90
      %p370 = pneg %p87
      %p371 = pneg %p111
      %p372 = pneg %p108
      %p373 = pneg %p132
      %p374 = pneg %p129
      %p375 = pneg %p153
      %p376 = pneg %p150
      %p377 = pneg %p174
      %p378 = pneg %p171
      %p379 = pneg %p195
      %p380 = pneg %p192
      %p381 = pneg %p216
      %p382 = pneg %p213
      %p383 = pneg %p237
      %p384 = pneg %p234
      %p385 = pneg %p258
      %p386 = pneg %p255
      %p387 = pneg %p284
      %p388 = pneg %p281
      %s389 = smul.u32 8, %s22
      %p390 = scmp.lt.s32.totalorder %s389, 63
      %s391 = scalar_select %p390, %s389, 63
      %s392 = smul.addr %s391, 8
      %s393 = scalar_lea.vmem %s11, %s392
      %s394 = smul.u32 8, %s22
      %p395 = scmp.lt.s32.totalorder %s394, 63
      %s396 = scalar_select %p395, %s394, 63
      %s397 = smul.addr %s396, 8
      %s398 = scalar_lea.vmem %s0, %s397
      %s399 = smul.u32 8, %s22
      %s400 = smul.u32 8, %s22
      %p401 = scmp.lt.s32.totalorder %s400, 63
      %s402 = scalar_select %p401, %s400, 63
      %s403 = smul.addr %s402, 8
      %s404 = scalar_lea.vmem %s1, %s403
      %s405 = smul.u32 8, %s22
      %s406 = smul.u32 8, %s22
      %p407 = scmp.lt.s32.totalorder %s406, 63
      %s408 = scalar_select %p407, %s406, 63
      %s409 = smul.addr %s408, 8
      %s410 = scalar_lea.vmem %s11, %s409
      %s411 = smul.u32 8, %s22
      %v412 = vld [vmem:[%s398] sm:$0xff]
      %v413 = vld [vmem:[%s398 + $0x8] sm:$0xff]
      %v414 = vld [vmem:[%s398 + $0x10] sm:$0xff]
      %v415 = vld [vmem:[%s398 + $0x18] sm:$0xff]
      %v416 = vld [vmem:[%s398 + $0x20] sm:$0xff]
      %v417 = vld [vmem:[%s398 + $0x28] sm:$0xff]
      %v418 = vld [vmem:[%s398 + $0x30] sm:$0xff]
      %v419 = vld [vmem:[%s398 + $0x38] sm:$0xff]
      %v420 = vld [vmem:[%s2] sm:$0x3]
      %v421 = vld [vmem:[%s404] sm:$0xff]
      %v422 = vld [vmem:[%s404 + $0x8] sm:$0xff]
      %v423 = vld [vmem:[%s404 + $0x10] sm:$0xff]
      %v424 = vld [vmem:[%s404 + $0x18] sm:$0xff]
      %v425 = vld [vmem:[%s404 + $0x20] sm:$0xff]
      %v426 = vld [vmem:[%s404 + $0x28] sm:$0xff]
      %v427 = vld [vmem:[%s404 + $0x30] sm:$0xff]
      %v428 = vld [vmem:[%s404 + $0x38] sm:$0xff]
      %v429 = vld [vmem:[%s3] sm:$0xff]
      %v430 = vld [vmem:[%s3 + $0x8] sm:$0xff]
      %vm431 = vcmask 130048
      %v433 = vsel %vm431, %v421, 0
      %v436 = vsel %vm431, %v422, 0
      %v439 = vsel %vm431, %v423, 0
      %v442 = vsel %vm431, %v424, 0
      %v445 = vsel %vm431, %v425, 0
      %v448 = vsel %vm431, %v426, 0
      %v451 = vsel %vm431, %v427, 0
      %v454 = vsel %vm431, %v428, 0
      %456 = vmatpush.msra.mxu0 0.0
      %457 = vmatpush.msra.mxu0 0.0
      %458 = vmatpush.msra.mxu0 0.0
      %459 = vmatpush.msra.mxu0 0.0
      %460 = vmatpush.msra.mxu0 0.0
      %461 = vmatpush.msra.mxu0 0.0
      %462 = vmatpush.msra.mxu0 0.0
      %463 = vmatpush.msra.mxu0 0.0
      %464 = vmatpush.msra.mxu0 0.0
      %465 = vmatpush.msra.mxu0 0.0
      %466 = vmatpush.msra.mxu0 0.0
      %467 = vmatpush.msra.mxu0 0.0
      %468 = vmatpush.msra.mxu0 0.0
      %469 = vmatpush.msra.mxu0 0.0
      %470 = vmatpush.msra.mxu0 %v430
      %471 = vmatpush.msra.mxu0 %v429
      %472 = vmatmul.f32.gmra.mxu0 %v433
      %v473 = vpop.f32.mrf.mxu0
      %v474 = vadd.f32 0.0, %v473
      %475 = vmatmul.f32.gmra.mxu0 %v436
      %v476 = vpop.f32.mrf.mxu0
      %v477 = vadd.f32 0.0, %v476
      %478 = vmatmul.f32.gmra.mxu0 %v439
      %v479 = vpop.f32.mrf.mxu0
      %v480 = vadd.f32 0.0, %v479
      %481 = vmatmul.f32.gmra.mxu0 %v442
      %v482 = vpop.f32.mrf.mxu0
      %v483 = vadd.f32 0.0, %v482
      %484 = vmatmul.f32.gmra.mxu0 %v445
      %v485 = vpop.f32.mrf.mxu0
      %v486 = vadd.f32 0.0, %v485
      %487 = vmatmul.f32.gmra.mxu0 %v448
      %v488 = vpop.f32.mrf.mxu0
      %v489 = vadd.f32 0.0, %v488
      %490 = vmatmul.f32.gmra.mxu0 %v451
      %v491 = vpop.f32.mrf.mxu0
      %v492 = vadd.f32 0.0, %v491
      %493 = vmatmul.f32.gmra.mxu0 %v454
      %v494 = vpop.f32.mrf.mxu0
      %v495 = vadd.f32 0.0, %v494
      %496 = vdwg.mxu0
      %vm497 = vcmask 15360
      %v499 = vsel %vm497, %v412, 0
      %v502 = vsel %vm497, %v413, 0
      %v505 = vsel %vm497, %v414, 0
      %v508 = vsel %vm497, %v415, 0
      %v511 = vsel %vm497, %v416, 0
      %v514 = vsel %vm497, %v417, 0
      %v517 = vsel %vm497, %v418, 0
      %v520 = vsel %vm497, %v419, 0
      %vm522 = vcmask 1041408
      %v524 = vsel %vm522, %v420, 0
      %526 = vmatpush.msra.mxu0 0.0
      %527 = vmatpush.msra.mxu0 0.0
      %528 = vmatpush.msra.mxu0 0.0
      %529 = vmatpush.msra.mxu0 0.0
      %530 = vmatpush.msra.mxu0 0.0
      %531 = vmatpush.msra.mxu0 0.0
      %532 = vmatpush.msra.mxu0 0.0
      %533 = vmatpush.msra.mxu0 0.0
      %534 = vmatpush.msra.mxu0 0.0
      %535 = vmatpush.msra.mxu0 0.0
      %536 = vmatpush.msra.mxu0 0.0
      %537 = vmatpush.msra.mxu0 0.0
      %538 = vmatpush.msra.mxu0 0.0
      %539 = vmatpush.msra.mxu0 0.0
      %540 = vmatpush.msra.mxu0 0.0
      %541 = vmatpush.msra.mxu0 %v524
      %542 = vmatmul.f32.gmra.mxu0 %v499
      %v543 = vpop.f32.mrf.mxu0
      %v544 = vadd.f32 %v474, %v543
      %545 = vmatmul.f32.gmra.mxu0 %v502
      %v546 = vpop.f32.mrf.mxu0
      %v547 = vadd.f32 %v477, %v546
      %548 = vmatmul.f32.gmra.mxu0 %v505
      %v549 = vpop.f32.mrf.mxu0
      %v550 = vadd.f32 %v480, %v549
      %551 = vmatmul.f32.gmra.mxu0 %v508
      %v552 = vpop.f32.mrf.mxu0
      %v553 = vadd.f32 %v483, %v552
      %554 = vmatmul.f32.gmra.mxu0 %v511
      %v555 = vpop.f32.mrf.mxu0
      %v556 = vadd.f32 %v486, %v555
      %557 = vmatmul.f32.gmra.mxu0 %v514
      %v558 = vpop.f32.mrf.mxu0
      %v559 = vadd.f32 %v489, %v558
      %560 = vmatmul.f32.gmra.mxu0 %v517
      %v561 = vpop.f32.mrf.mxu0
      %v562 = vadd.f32 %v492, %v561
      %563 = vmatmul.f32.gmra.mxu0 %v520
      %v564 = vpop.f32.mrf.mxu0
      %v565 = vadd.f32 %v495, %v564
      %566 = vdwg.mxu0
      %v567 = vld [vmem:[%s4] sm:$0x1]
      %v569 = vperm.slane %v567, 0
      %v571 = vadd.f32 %v544, %v569
      %v572 = vadd.f32 %v547, %v569
      %v573 = vadd.f32 %v550, %v569
      %v574 = vadd.f32 %v553, %v569
      %v575 = vadd.f32 %v556, %v569
      %v576 = vadd.f32 %v559, %v569
      %v577 = vadd.f32 %v562, %v569
      %v578 = vadd.f32 %v565, %v569
      %v579 = vlaneseq
      %v580 = vand.u32 %v579, 127
      %vm581 = vcmp.lt.s32.totalorder %v580, 32
      %v582 = vtanh.pop %v571
      %v583 = vtanh.pop %v572
      %v584 = vtanh.pop %v573
      %v585 = vtanh.pop %v574
      %v586 = vtanh.pop %v575
      %v587 = vtanh.pop %v576
      %v588 = vtanh.pop %v577
      %v589 = vtanh.pop %v578
      %v590 = vsel %vm581, 1, 0
      %vm591 = vcmp.eq.s32.totalorder %v590, 1
      %v592 = vsel %vm591, %v582, %v571
      %v593 = vsel %vm591, %v583, %v572
      %v594 = vsel %vm591, %v584, %v573
      %v595 = vsel %vm591, %v585, %v574
      %v596 = vsel %vm591, %v586, %v575
      %v597 = vsel %vm591, %v587, %v576
      %v598 = vsel %vm591, %v588, %v577
      %v599 = vsel %vm591, %v589, %v578
      %vm600 = vcmp.ge.s32.totalorder %v580, 32
      %v601 = vmax.f32 %v592, 0.0
      %v602 = vmax.f32 %v593, 0.0
      %v603 = vmax.f32 %v594, 0.0
      %v604 = vmax.f32 %v595, 0.0
      %v605 = vmax.f32 %v596, 0.0
      %v606 = vmax.f32 %v597, 0.0
      %v607 = vmax.f32 %v598, 0.0
      %v608 = vmax.f32 %v599, 0.0
      %v609 = vsel %vm600, 1, 0
      %vm610 = vcmp.eq.s32.totalorder %v609, 1
      %v611 = vsel %vm610, %v601, %v592
      %v612 = vsel %vm610, %v602, %v593
      %v613 = vsel %vm610, %v603, %v594
      %v614 = vsel %vm610, %v604, %v595
      %v615 = vsel %vm610, %v605, %v596
      %v616 = vsel %vm610, %v606, %v597
      %v617 = vsel %vm610, %v607, %v598
      %v618 = vsel %vm610, %v608, %v599
      %v619 = vld [vmem:[%s5] sm:$0xff]
      %v620 = vld [vmem:[%s5 + $0x8] sm:$0xff]
      %v621 = vld [vmem:[%s5 + $0x10] sm:$0xff]
      %v622 = vld [vmem:[%s5 + $0x18] sm:$0xff]
      %v623 = vld [vmem:[%s5 + $0x20] sm:$0xff]
      %v624 = vld [vmem:[%s5 + $0x28] sm:$0xff]
      %v625 = vld [vmem:[%s5 + $0x30] sm:$0xff]
      %v626 = vld [vmem:[%s5 + $0x38] sm:$0xff]
      %v627 = vld [vmem:[%s6] sm:$0x1]
      %v629 = vperm.slane %v627, 0
      %vm631 = vcmask 523264
      %v633 = vsel %vm631, %v611, 0
      %v636 = vsel %vm631, %v612, 0
      %v639 = vsel %vm631, %v613, 0
      %v642 = vsel %vm631, %v614, 0
      %v645 = vsel %vm631, %v615, 0
      %v648 = vsel %vm631, %v616, 0
      %v651 = vsel %vm631, %v617, 0
      %v654 = vsel %vm631, %v618, 0
      %656 = vmatpush.msra.mxu0 0.0
      %657 = vmatpush.msra.mxu0 0.0
      %658 = vmatpush.msra.mxu0 0.0
      %659 = vmatpush.msra.mxu0 0.0
      %660 = vmatpush.msra.mxu0 0.0
      %661 = vmatpush.msra.mxu0 0.0
      %662 = vmatpush.msra.mxu0 0.0
      %663 = vmatpush.msra.mxu0 0.0
      %664 = vmatpush.msra.mxu0 %v626
      %665 = vmatpush.msra.mxu0 %v625
      %666 = vmatpush.msra.mxu0 %v624
      %667 = vmatpush.msra.mxu0 %v623
      %668 = vmatpush.msra.mxu0 %v622
      %669 = vmatpush.msra.mxu0 %v621
      %670 = vmatpush.msra.mxu0 %v620
      %671 = vmatpush.msra.mxu0 %v619
      %672 = vmatmul.f32.gmra.mxu0 %v633
      %v673 = vpop.f32.mrf.mxu0
      %v674 = vadd.f32 %v629, %v673
      %675 = vmatmul.f32.gmra.mxu0 %v636
      %v676 = vpop.f32.mrf.mxu0
      %v677 = vadd.f32 %v629, %v676
      %678 = vmatmul.f32.gmra.mxu0 %v639
      %v679 = vpop.f32.mrf.mxu0
      %v680 = vadd.f32 %v629, %v679
      %681 = vmatmul.f32.gmra.mxu0 %v642
      %v682 = vpop.f32.mrf.mxu0
      %v683 = vadd.f32 %v629, %v682
      %684 = vmatmul.f32.gmra.mxu0 %v645
      %v685 = vpop.f32.mrf.mxu0
      %v686 = vadd.f32 %v629, %v685
      %687 = vmatmul.f32.gmra.mxu0 %v648
      %v688 = vpop.f32.mrf.mxu0
      %v689 = vadd.f32 %v629, %v688
      %690 = vmatmul.f32.gmra.mxu0 %v651
      %v691 = vpop.f32.mrf.mxu0
      %v692 = vadd.f32 %v629, %v691
      %693 = vmatmul.f32.gmra.mxu0 %v654
      %v694 = vpop.f32.mrf.mxu0
      %v695 = vadd.f32 %v629, %v694
      %696 = vdwg.mxu0
      %v697 = vtanh.pop %v674
      %v698 = vtanh.pop %v677
      %v699 = vtanh.pop %v680
      %v700 = vtanh.pop %v683
      %v701 = vtanh.pop %v686
      %v702 = vtanh.pop %v689
      %v703 = vtanh.pop %v692
      %v704 = vtanh.pop %v695
      %v705 = vsel %vm591, %v697, %v674
      %v706 = vsel %vm591, %v698, %v677
      %v707 = vsel %vm591, %v699, %v680
      %v708 = vsel %vm591, %v700, %v683
      %v709 = vsel %vm591, %v701, %v686
      %v710 = vsel %vm591, %v702, %v689
      %v711 = vsel %vm591, %v703, %v692
      %v712 = vsel %vm591, %v704, %v695
      %v713 = vmax.f32 %v705, 0.0
      %v714 = vmax.f32 %v706, 0.0
      %v715 = vmax.f32 %v707, 0.0
      %v716 = vmax.f32 %v708, 0.0
      %v717 = vmax.f32 %v709, 0.0
      %v718 = vmax.f32 %v710, 0.0
      %v719 = vmax.f32 %v711, 0.0
      %v720 = vmax.f32 %v712, 0.0
      %v721 = vsel %vm610, %v713, %v705
      %v722 = vsel %vm610, %v714, %v706
      %v723 = vsel %vm610, %v715, %v707
      %v724 = vsel %vm610, %v716, %v708
      %v725 = vsel %vm610, %v717, %v709
      %v726 = vsel %vm610, %v718, %v710
      %v727 = vsel %vm610, %v719, %v711
      %v728 = vsel %vm610, %v720, %v712
      %v729 = vld [vmem:[%s7] sm:$0xff]
      %v730 = vld [vmem:[%s7 + $0x8] sm:$0xff]
      %v731 = vld [vmem:[%s7 + $0x10] sm:$0xff]
      %v732 = vld [vmem:[%s7 + $0x18] sm:$0xff]
      %v733 = vld [vmem:[%s7 + $0x20] sm:$0xff]
      %v734 = vld [vmem:[%s7 + $0x28] sm:$0xff]
      %v735 = vld [vmem:[%s7 + $0x30] sm:$0xff]
      %v736 = vld [vmem:[%s7 + $0x38] sm:$0xff]
      %v737 = vld [vmem:[%s8] sm:$0x1]
      %v739 = vperm.slane %v737, 0
      %v742 = vsel %vm631, %v721, 0
      %v745 = vsel %vm631, %v722, 0
      %v748 = vsel %vm631, %v723, 0
      %v751 = vsel %vm631, %v724, 0
      %v754 = vsel %vm631, %v725, 0
      %v757 = vsel %vm631, %v726, 0
      %v760 = vsel %vm631, %v727, 0
      %v763 = vsel %vm631, %v728, 0
      %765 = vmatpush.msra.mxu0 0.0
      %766 = vmatpush.msra.mxu0 0.0
      %767 = vmatpush.msra.mxu0 0.0
      %768 = vmatpush.msra.mxu0 0.0
      %769 = vmatpush.msra.mxu0 0.0
      %770 = vmatpush.msra.mxu0 0.0
      %771 = vmatpush.msra.mxu0 0.0
      %772 = vmatpush.msra.mxu0 0.0
      %773 = vmatpush.msra.mxu0 %v736
      %774 = vmatpush.msra.mxu0 %v735
      %775 = vmatpush.msra.mxu0 %v734
      %776 = vmatpush.msra.mxu0 %v733
      %777 = vmatpush.msra.mxu0 %v732
      %778 = vmatpush.msra.mxu0 %v731
      %779 = vmatpush.msra.mxu0 %v730
      %780 = vmatpush.msra.mxu0 %v729
      %781 = vmatmul.f32.gmra.mxu0 %v742
      %v782 = vpop.f32.mrf.mxu0
      %v783 = vadd.f32 %v739, %v782
      %784 = vmatmul.f32.gmra.mxu0 %v745
      %v785 = vpop.f32.mrf.mxu0
      %v786 = vadd.f32 %v739, %v785
      %787 = vmatmul.f32.gmra.mxu0 %v748
      %v788 = vpop.f32.mrf.mxu0
      %v789 = vadd.f32 %v739, %v788
      %790 = vmatmul.f32.gmra.mxu0 %v751
      %v791 = vpop.f32.mrf.mxu0
      %v792 = vadd.f32 %v739, %v791
      %793 = vmatmul.f32.gmra.mxu0 %v754
      %v794 = vpop.f32.mrf.mxu0
      %v795 = vadd.f32 %v739, %v794
      %796 = vmatmul.f32.gmra.mxu0 %v757
      %v797 = vpop.f32.mrf.mxu0
      %v798 = vadd.f32 %v739, %v797
      %799 = vmatmul.f32.gmra.mxu0 %v760
      %v800 = vpop.f32.mrf.mxu0
      %v801 = vadd.f32 %v739, %v800
      %802 = vmatmul.f32.gmra.mxu0 %v763
      %v803 = vpop.f32.mrf.mxu0
      %v804 = vadd.f32 %v739, %v803
      %805 = vdwg.mxu0
      %vm806 = vcmp.lt.s32.totalorder %v580, 8
      %v807 = vtanh.pop %v783
      %v808 = vtanh.pop %v786
      %v809 = vtanh.pop %v789
      %v810 = vtanh.pop %v792
      %v811 = vtanh.pop %v795
      %v812 = vtanh.pop %v798
      %v813 = vtanh.pop %v801
      %v814 = vtanh.pop %v804
      %v815 = vsel %vm806, 1, 0
      %vm816 = vcmp.eq.s32.totalorder %v815, 1
      %v817 = vsel %vm816, %v807, %v783
      %v818 = vsel %vm816, %v808, %v786
      %v819 = vsel %vm816, %v809, %v789
      %v820 = vsel %vm816, %v810, %v792
      %v821 = vsel %vm816, %v811, %v795
      %v822 = vsel %vm816, %v812, %v798
      %v823 = vsel %vm816, %v813, %v801
      %v824 = vsel %vm816, %v814, %v804
      %v825 = vld [vmem:[%s9] sm:$0xff]
      %v826 = vld [vmem:[%s9 + $0x8] sm:$0xff]
      %v827 = vld [vmem:[%s9 + $0x10] sm:$0xff]
      %v828 = vld [vmem:[%s9 + $0x18] sm:$0xff]
      %vm829 = vcmask 261120
      %v831 = vsel %vm829, %v817, 0
      %v834 = vsel %vm829, %v818, 0
      %v837 = vsel %vm829, %v819, 0
      %v840 = vsel %vm829, %v820, 0
      %v843 = vsel %vm829, %v821, 0
      %v846 = vsel %vm829, %v822, 0
      %v849 = vsel %vm829, %v823, 0
      %v852 = vsel %vm829, %v824, 0
      %854 = vmatpush.msra.mxu0 0.0
      %855 = vmatpush.msra.mxu0 0.0
      %856 = vmatpush.msra.mxu0 0.0
      %857 = vmatpush.msra.mxu0 0.0
      %858 = vmatpush.msra.mxu0 0.0
      %859 = vmatpush.msra.mxu0 0.0
      %860 = vmatpush.msra.mxu0 0.0
      %861 = vmatpush.msra.mxu0 0.0
      %862 = vmatpush.msra.mxu0 0.0
      %863 = vmatpush.msra.mxu0 0.0
      %864 = vmatpush.msra.mxu0 0.0
      %865 = vmatpush.msra.mxu0 0.0
      %866 = vmatpush.msra.mxu0 %v828
      %867 = vmatpush.msra.mxu0 %v827
      %868 = vmatpush.msra.mxu0 %v826
      %869 = vmatpush.msra.mxu0 %v825
      %870 = vmatmul.f32.gmra.mxu0 %v831
      %v871 = vpop.f32.mrf.mxu0
      %v872 = vadd.f32 0.0, %v871
      %873 = vmatmul.f32.gmra.mxu0 %v834
      %v874 = vpop.f32.mrf.mxu0
      %v875 = vadd.f32 0.0, %v874
      %876 = vmatmul.f32.gmra.mxu0 %v837
      %v877 = vpop.f32.mrf.mxu0
      %v878 = vadd.f32 0.0, %v877
      %879 = vmatmul.f32.gmra.mxu0 %v840
      %v880 = vpop.f32.mrf.mxu0
      %v881 = vadd.f32 0.0, %v880
      %882 = vmatmul.f32.gmra.mxu0 %v843
      %v883 = vpop.f32.mrf.mxu0
      %v884 = vadd.f32 0.0, %v883
      %885 = vmatmul.f32.gmra.mxu0 %v846
      %v886 = vpop.f32.mrf.mxu0
      %v887 = vadd.f32 0.0, %v886
      %888 = vmatmul.f32.gmra.mxu0 %v849
      %v889 = vpop.f32.mrf.mxu0
      %v890 = vadd.f32 0.0, %v889
      %891 = vmatmul.f32.gmra.mxu0 %v852
      %v892 = vpop.f32.mrf.mxu0
      %v893 = vadd.f32 0.0, %v892
      %894 = vdwg.mxu0
      %v895 = vmul.f32 %v817, %v872
      %v896 = vmul.f32 %v818, %v875
      %v897 = vmul.f32 %v819, %v878
      %v898 = vmul.f32 %v820, %v881
      %v899 = vmul.f32 %v821, %v884
      %v900 = vmul.f32 %v822, %v887
      %v901 = vmul.f32 %v823, %v890
      %v902 = vmul.f32 %v824, %v893
      %v903 = vld [vmem:[%s10] sm:$0xff]
      %v904 = vld [vmem:[%s10 + $0x8] sm:$0xff]
      %v905 = vld [vmem:[%s10 + $0x10] sm:$0xff]
      %v906 = vld [vmem:[%s10 + $0x18] sm:$0xff]
      %v908 = vsel %vm829, %v895, 0
      %v911 = vsel %vm829, %v896, 0
      %v914 = vsel %vm829, %v897, 0
      %v917 = vsel %vm829, %v898, 0
      %v920 = vsel %vm829, %v899, 0
      %v923 = vsel %vm829, %v900, 0
      %v926 = vsel %vm829, %v901, 0
      %v929 = vsel %vm829, %v902, 0
      %931 = vmatpush.msra.mxu0 0.0
      %932 = vmatpush.msra.mxu0 0.0
      %933 = vmatpush.msra.mxu0 0.0
      %934 = vmatpush.msra.mxu0 0.0
      %935 = vmatpush.msra.mxu0 0.0
      %936 = vmatpush.msra.mxu0 0.0
      %937 = vmatpush.msra.mxu0 0.0
      %938 = vmatpush.msra.mxu0 0.0
      %939 = vmatpush.msra.mxu0 0.0
      %940 = vmatpush.msra.mxu0 0.0
      %941 = vmatpush.msra.mxu0 0.0
      %942 = vmatpush.msra.mxu0 0.0
      %943 = vmatpush.msra.mxu0 %v906
      %944 = vmatpush.msra.mxu0 %v905
      %945 = vmatpush.msra.mxu0 %v904
      %946 = vmatpush.msra.mxu0 %v903
      %947 = vmatmul.f32.gmra.mxu0 %v908
      %v948 = vpop.f32.mrf.mxu0
      %v949 = vadd.f32 0.0, %v948
      %950 = vmatmul.f32.gmra.mxu0 %v911
      %v951 = vpop.f32.mrf.mxu0
      %v952 = vadd.f32 0.0, %v951
      %953 = vmatmul.f32.gmra.mxu0 %v914
      %v954 = vpop.f32.mrf.mxu0
      %v955 = vadd.f32 0.0, %v954
      %956 = vmatmul.f32.gmra.mxu0 %v917
      %v957 = vpop.f32.mrf.mxu0
      %v958 = vadd.f32 0.0, %v957
      %959 = vmatmul.f32.gmra.mxu0 %v920
      %v960 = vpop.f32.mrf.mxu0
      %v961 = vadd.f32 0.0, %v960
      %962 = vmatmul.f32.gmra.mxu0 %v923
      %v963 = vpop.f32.mrf.mxu0
      %v964 = vadd.f32 0.0, %v963
      %965 = vmatmul.f32.gmra.mxu0 %v926
      %v966 = vpop.f32.mrf.mxu0
      %v967 = vadd.f32 0.0, %v966
      %968 = vmatmul.f32.gmra.mxu0 %v929
      %v969 = vpop.f32.mrf.mxu0
      %v970 = vadd.f32 0.0, %v969
      %971 = vdwg.mxu0
      %vm972 = vcmask 23552
      %973 = vst.msk [vmem:[%s410] sm:$0xff] %vm972, %v949
      %974 = vst.msk [vmem:[%s410 + $0x8] sm:$0xff] %vm972, %v952
      %975 = vst.msk [vmem:[%s410 + $0x10] sm:$0xff] %vm972, %v955
      %976 = vst.msk [vmem:[%s410 + $0x18] sm:$0xff] %vm972, %v958
      %977 = vst.msk [vmem:[%s410 + $0x20] sm:$0xff] %vm972, %v961
      %978 = vst.msk [vmem:[%s410 + $0x28] sm:$0xff] %vm972, %v964
      %979 = vst.msk [vmem:[%s410 + $0x30] sm:$0xff] %vm972, %v967
      %980 = vst.msk [vmem:[%s410 + $0x38] sm:$0xff] %vm972, %v970
      %s981 = smul.u32 8, %s22
      %p982 = scmp.lt.s32.totalorder %s981, 63
      %s983 = scalar_select %p982, %s981, 63
      %s984 = smul.addr %s983, 8
      %s985 = scalar_lea.vmem %s11, %s984
      // Predicated region
      $region65: #{fwd.1} parent=63 // pred_check
        %p986 = pneg %p281
      $region66: #{fwd.1} parent=63 // pred_check_branch
        %988 = sbr.rel (%p986) target = $region68
      $region67: #{fwd.1} parent=63 // pred_region
        %s989 = smul.u32 8, %s22
      $region68: #{fwd.1} parent=63 // pred_fallthru
        _
    $region64: #{fwd.1} parent=5 // pred_fallthru
      _
    %p990 = scmp.le.s32.totalorder 2, %s17
    // Predicated region
    $region69: #{fwd.1} parent=5 // pred_check
      %p991 = pneg %p990
    $region70: #{fwd.1} parent=5 // pred_check_branch
      %993 = sbr.rel (%p991) target = $region72
    $region71: #{fwd.1} parent=5 // pred_region
      %s994 = ssub.s32 %s17, 2
      // Predicated region
      $region73: #{fwd.1} parent=71 // pred_check
        %p995 = pneg %p287
      $region74: #{fwd.1} parent=71 // pred_check_branch
        %997 = sbr.rel (%p995) target = $region76
      $region75: #{fwd.1} parent=71 // pred_region
        %s998 = smul.u32 8, %s23
        %p999 = scmp.lt.s32.totalorder %s998, 63
        %s1000 = scalar_select %p999, %s998, 63
        %s1001 = smul.addr %s1000, 8
        %s1002 = scalar_lea.vmem %s11, %s1001
      $region76: #{fwd.1} parent=71 // pred_fallthru
        _
    $region72: #{fwd.1} parent=5 // pred_fallthru
      _
  $region6: #{fwd.1} parent=0 // loop_footer
    %s21 = sadd.s32 1, %s17
  $region7: #{fwd.1} parent=0 // loop_footer_branch
    %16 = sbr.rel target = $region3
  $region8: #{fwd.1} parent=0 // loop_exit
    _

</llo_original>
